<compile_context>
chip_gen: v5e
topology: v5e:2x2
jax: 0.10.0
libtpu: 0.0.40
codegen_flags: <defaults>
</compile_context>

<pallas_src>
import jax
import jax.numpy as jnp
from jax.experimental import pallas as pl
from jax.experimental.pallas import tpu as pltpu


def _dual_classifier_kernel(si_ref, sj_ref, ti_ref, tj_ref, w_ref, b_ref, o_ref):
    # Linear layer on the virtually-concatenated features: four partial MXU
    # matmuls accumulated in f32 (equivalent to cat(...) @ W.T, without ever
    # materializing the [N, 4E] concat).
    acc = jnp.dot(si_ref[...], w_ref[0], preferred_element_type=jnp.float32)
    acc += jnp.dot(sj_ref[...], w_ref[1], preferred_element_type=jnp.float32)
    acc += jnp.dot(ti_ref[...], w_ref[2], preferred_element_type=jnp.float32)
    acc += jnp.dot(tj_ref[...], w_ref[3], preferred_element_type=jnp.float32)

    # TODO(synk): dropout is identity at inference (training=False); training-mode
    # dropout (pltpu.prng_*) is not applied here.

    logits = acc + b_ref[...]                     # [block_n, C] + [1, C] broadcast

    # log_softmax along dim=1 (the class / last axis for 2-D inputs), max-shifted.
    m = jnp.max(logits, axis=-1, keepdims=True)
    shifted = logits - m
    lse = jnp.log(jnp.sum(jnp.exp(shifted), axis=-1, keepdims=True))
    o_ref[...] = (shifted - lse).astype(o_ref.dtype)


def _round_up(x, m):
    return ((x + m - 1) // m) * m


def dual_classifier_forward(s_i, s_j, t_i, t_j, w_t, b, *, block_rows=1024):
    """s_i, s_j, t_i, t_j: [N, E];  w_t: [4E, C] (= PyTorch weight.T);  b: [C].

    block_rows: rows per grid step (sweepable). Keep the double-buffered
    footprint (4 inputs x 2 buffers x block_rows x E) well under the scoped
    VMEM limit (16 MiB on v5e by default, 32 MiB on v6e/v7x).
    """
    n, e = s_i.shape
    c = w_t.shape[1]
    assert w_t.shape[0] == 4 * e, "w_t must be [4*E, C]"

    # Stacked weight [4, E, C]: slice k multiplies the k-th concatenated chunk.
    w4 = w_t.reshape(4, e, c)
    b2d = b.reshape(1, c)

    block_n = min(block_rows, _round_up(n, 8))
    grid = (pl.cdiv(n, block_n),)

    out = pl.pallas_call(
        _dual_classifier_kernel,
        out_shape=jax.ShapeDtypeStruct((n, c), jnp.float32),
        grid=grid,
        in_specs=[
            pl.BlockSpec((block_n, e), lambda i: (i, 0)),   # s_i
            pl.BlockSpec((block_n, e), lambda i: (i, 0)),   # s_j
            pl.BlockSpec((block_n, e), lambda i: (i, 0)),   # t_i
            pl.BlockSpec((block_n, e), lambda i: (i, 0)),   # t_j
            pl.BlockSpec((4, e, c), lambda i: (0, 0, 0)),   # W (resident)
            pl.BlockSpec((1, c), lambda i: (0, 0)),         # b (resident)
        ],
        out_specs=pl.BlockSpec((block_n, c), lambda i: (i, 0)),
        compiler_params=pltpu.CompilerParams(
            dimension_semantics=("parallel",),
        ),
    )(s_i, s_j, t_i, t_j, w4, b2d)
    return out


def _reference(s_i, s_j, t_i, t_j, w_t, b):
    x = jnp.concatenate([s_i, s_j, t_i, t_j], axis=-1)
    return jax.nn.log_softmax(x @ w_t + b, axis=1)


if __name__ == "__main__":
    key = jax.random.PRNGKey(0)

    # --- Test 1: small, module-consistent shapes (N=8, E=8 -> in=32, C=4). ---
    N, E, C = 8, 8, 4
    k1, k2, k3, k4, kw, kb, k5 = jax.random.split(key, 7)

    s_i = jax.random.normal(k1, (N, E), dtype=jnp.float32)
    s_j = jax.random.normal(k2, (N, E), dtype=jnp.float32)
    t_i = jax.random.normal(k3, (N, E), dtype=jnp.float32)
    t_j = jax.random.normal(k4, (N, E), dtype=jnp.float32)

    # nn.Linear-style uniform init, bound = 1/sqrt(fan_in).
    fan_in = 4 * E
    bound = 1.0 / jnp.sqrt(jnp.float32(fan_in))
    w = jax.random.uniform(kw, (C, fan_in), minval=-bound, maxval=bound,
                           dtype=jnp.float32)          # PyTorch layout [out, in]
    b = jax.random.uniform(kb, (C,), minval=-bound, maxval=bound,
                           dtype=jnp.float32)
    w_t = w.T                                          # [4E, C] for the kernel

    out = dual_classifier_forward(s_i, s_j, t_i, t_j, w_t, b)
    out = jax.block_until_ready(out)
    ref = _reference(s_i, s_j, t_i, t_j, w_t, b)
    assert jnp.allclose(out, ref, atol=1e-5, rtol=1e-5), "mismatch vs reference (N=8)"

    # --- Test 2: multi-block grid (N=256, block_rows=128 -> 2 pipelined steps). ---
    N2 = 256
    ka, kb2, kc, kd = jax.random.split(k5, 4)
    s_i2 = jax.random.normal(ka, (N2, E), dtype=jnp.float32)
    s_j2 = jax.random.normal(kb2, (N2, E), dtype=jnp.float32)
    t_i2 = jax.random.normal(kc, (N2, E), dtype=jnp.float32)
    t_j2 = jax.random.normal(kd, (N2, E), dtype=jnp.float32)

    out2 = dual_classifier_forward(s_i2, s_j2, t_i2, t_j2, w_t, b, block_rows=128)
    out2 = jax.block_until_ready(out2)
    ref2 = _reference(s_i2, s_j2, t_i2, t_j2, w_t, b)
    assert jnp.allclose(out2, ref2, atol=1e-5, rtol=1e-5), "mismatch vs reference (N=256)"

    print("KERNEL_OK")
</pallas_src>

<mosaic_0001>
module attributes {stable_mosaic.version = 11 : i64} {
  func.func @_dual_classifier_kernel(%arg0: i32, %arg1: memref<8x8xf32, #tpu.memory_space<vmem>>, %arg2: memref<8x8xf32, #tpu.memory_space<vmem>>, %arg3: memref<8x8xf32, #tpu.memory_space<vmem>>, %arg4: memref<8x8xf32, #tpu.memory_space<vmem>>, %arg5: memref<4x8x4xf32, #tpu.memory_space<vmem>>, %arg6: memref<1x4xf32, #tpu.memory_space<vmem>>, %arg7: memref<8x4xf32, #tpu.memory_space<vmem>>) attributes {dimension_semantics = [#tpu.dimension_semantics<parallel>], iteration_bounds = array<i64: 1>, scalar_prefetch = 0 : i64, scratch_operands = 0 : i64, tpu.core_type = #tpu.core_type<tc>, window_params = [{transform_indices = @transform_0, window_bounds = array<i64: 8, 8>}, {transform_indices = @transform_1, window_bounds = array<i64: 8, 8>}, {transform_indices = @transform_2, window_bounds = array<i64: 8, 8>}, {transform_indices = @transform_3, window_bounds = array<i64: 8, 8>}, {pipeline_mode = #tpu.pipeline_mode<synchronous>, transform_indices = @transform_4, window_bounds = array<i64: 4, 8, 4>}, {pipeline_mode = #tpu.pipeline_mode<synchronous>, transform_indices = @transform_5, window_bounds = array<i64: 1, 4>}, {transform_indices = @transform_6, window_bounds = array<i64: 8, 4>}]} {
    %c0 = arith.constant 0 : index
    %c0_0 = arith.constant 0 : index
    %0 = vector.load %arg1[%c0, %c0_0] : memref<8x8xf32, #tpu.memory_space<vmem>>, vector<8x8xf32>
    %c0_1 = arith.constant 0 : index
    %c0_2 = arith.constant 0 : index
    %c0_3 = arith.constant 0 : index
    %1 = vector.load %arg5[%c0_1, %c0_2, %c0_3] : memref<4x8x4xf32, #tpu.memory_space<vmem>>, vector<1x8x4xf32>
    %2 = vector.shape_cast %1 : vector<1x8x4xf32> to vector<8x4xf32>
    %cst = arith.constant dense<0.000000e+00> : vector<8x4xf32>
    %3 = tpu.matmul %0, %2, %cst {dimension_numbers = #tpu.dot_dimension_numbers<[1], [0], [0], [1], [0, 0, 1, 1], [], []>} : vector<8x8xf32>, vector<8x4xf32>, vector<8x4xf32> -> vector<8x4xf32>
    %c0_4 = arith.constant 0 : index
    %c0_5 = arith.constant 0 : index
    %4 = vector.load %arg2[%c0_4, %c0_5] : memref<8x8xf32, #tpu.memory_space<vmem>>, vector<8x8xf32>
    %c1 = arith.constant 1 : index
    %c0_6 = arith.constant 0 : index
    %c0_7 = arith.constant 0 : index
    %5 = vector.load %arg5[%c1, %c0_6, %c0_7] : memref<4x8x4xf32, #tpu.memory_space<vmem>>, vector<1x8x4xf32>
    %6 = vector.shape_cast %5 : vector<1x8x4xf32> to vector<8x4xf32>
    %cst_8 = arith.constant dense<0.000000e+00> : vector<8x4xf32>
    %7 = tpu.matmul %4, %6, %cst_8 {dimension_numbers = #tpu.dot_dimension_numbers<[1], [0], [0], [1], [0, 0, 1, 1], [], []>} : vector<8x8xf32>, vector<8x4xf32>, vector<8x4xf32> -> vector<8x4xf32>
    %8 = arith.addf %3, %7 : vector<8x4xf32>
    %c0_9 = arith.constant 0 : index
    %c0_10 = arith.constant 0 : index
    %9 = vector.load %arg3[%c0_9, %c0_10] : memref<8x8xf32, #tpu.memory_space<vmem>>, vector<8x8xf32>
    %c2 = arith.constant 2 : index
    %c0_11 = arith.constant 0 : index
    %c0_12 = arith.constant 0 : index
    %10 = vector.load %arg5[%c2, %c0_11, %c0_12] : memref<4x8x4xf32, #tpu.memory_space<vmem>>, vector<1x8x4xf32>
    %11 = vector.shape_cast %10 : vector<1x8x4xf32> to vector<8x4xf32>
    %cst_13 = arith.constant dense<0.000000e+00> : vector<8x4xf32>
    %12 = tpu.matmul %9, %11, %cst_13 {dimension_numbers = #tpu.dot_dimension_numbers<[1], [0], [0], [1], [0, 0, 1, 1], [], []>} : vector<8x8xf32>, vector<8x4xf32>, vector<8x4xf32> -> vector<8x4xf32>
    %13 = arith.addf %8, %12 : vector<8x4xf32>
    %c0_14 = arith.constant 0 : index
    %c0_15 = arith.constant 0 : index
    %14 = vector.load %arg4[%c0_14, %c0_15] : memref<8x8xf32, #tpu.memory_space<vmem>>, vector<8x8xf32>
    %c3 = arith.constant 3 : index
    %c0_16 = arith.constant 0 : index
    %c0_17 = arith.constant 0 : index
    %15 = vector.load %arg5[%c3, %c0_16, %c0_17] : memref<4x8x4xf32, #tpu.memory_space<vmem>>, vector<1x8x4xf32>
    %16 = vector.shape_cast %15 : vector<1x8x4xf32> to vector<8x4xf32>
    %cst_18 = arith.constant dense<0.000000e+00> : vector<8x4xf32>
    %17 = tpu.matmul %14, %16, %cst_18 {dimension_numbers = #tpu.dot_dimension_numbers<[1], [0], [0], [1], [0, 0, 1, 1], [], []>} : vector<8x8xf32>, vector<8x4xf32>, vector<8x4xf32> -> vector<8x4xf32>
    %18 = arith.addf %13, %17 : vector<8x4xf32>
    %c0_19 = arith.constant 0 : index
    %c0_20 = arith.constant 0 : index
    %19 = vector.load %arg6[%c0_19, %c0_20] : memref<1x4xf32, #tpu.memory_space<vmem>>, vector<1x4xf32>
    %20 = vector.broadcast %19 : vector<1x4xf32> to vector<8x4xf32>
    %21 = arith.addf %18, %20 : vector<8x4xf32>
    %cst_21 = arith.constant dense<0xFF800000> : vector<8xf32>
    %22 = vector.multi_reduction <maximumf>, %21, %cst_21 [1] : vector<8x4xf32> to vector<8xf32>
    %23 = vector.shape_cast %22 : vector<8xf32> to vector<8x1xf32>
    %24 = vector.broadcast %23 : vector<8x1xf32> to vector<8x4xf32>
    %25 = arith.subf %21, %24 : vector<8x4xf32>
    %26 = math.exp %25 : vector<8x4xf32>
    %cst_22 = arith.constant dense<0.000000e+00> : vector<8xf32>
    %27 = vector.multi_reduction <add>, %26, %cst_22 [1] : vector<8x4xf32> to vector<8xf32>
    %28 = vector.shape_cast %27 : vector<8xf32> to vector<8x1xf32>
    %29 = math.log %28 : vector<8x1xf32>
    %30 = vector.broadcast %29 : vector<8x1xf32> to vector<8x4xf32>
    %31 = arith.subf %25, %30 : vector<8x4xf32>
    %c0_23 = arith.constant 0 : index
    %c0_24 = arith.constant 0 : index
    %32 = vector.load %arg7[%c0_23, %c0_24] : memref<8x4xf32, #tpu.memory_space<vmem>>, vector<8x4xf32>
    tpu.vector_store %arg7[%c0_23, %c0_24], %31 {strides = array<i32>} : memref<8x4xf32, #tpu.memory_space<vmem>>, vector<8x4xf32>,
    return
  }
  func.func @transform_0(%arg0: i32) -> (i32, i32) {
    %c0_i32 = arith.constant 0 : i32
    %c0_i32_0 = arith.constant 0 : i32
    return %arg0, %c0_i32 : i32, i32
  }
  func.func @transform_1(%arg0: i32) -> (i32, i32) {
    %c0_i32 = arith.constant 0 : i32
    %c0_i32_0 = arith.constant 0 : i32
    return %arg0, %c0_i32 : i32, i32
  }
  func.func @transform_2(%arg0: i32) -> (i32, i32) {
    %c0_i32 = arith.constant 0 : i32
    %c0_i32_0 = arith.constant 0 : i32
    return %arg0, %c0_i32 : i32, i32
  }
  func.func @transform_3(%arg0: i32) -> (i32, i32) {
    %c0_i32 = arith.constant 0 : i32
    %c0_i32_0 = arith.constant 0 : i32
    return %arg0, %c0_i32 : i32, i32
  }
  func.func @transform_4(%arg0: i32) -> (i32, i32, i32) {
    %c0_i32 = arith.constant 0 : i32
    %c0_i32_0 = arith.constant 0 : i32
    %c0_i32_1 = arith.constant 0 : i32
    %c0_i32_2 = arith.constant 0 : i32
    return %c0_i32, %c0_i32_0, %c0_i32_1 : i32, i32, i32
  }
  func.func @transform_5(%arg0: i32) -> (i32, i32) {
    %c0_i32 = arith.constant 0 : i32
    %c0_i32_0 = arith.constant 0 : i32
    %c0_i32_1 = arith.constant 0 : i32
    return %c0_i32, %c0_i32_0 : i32, i32
  }
  func.func @transform_6(%arg0: i32) -> (i32, i32) {
    %c0_i32 = arith.constant 0 : i32
    %c0_i32_0 = arith.constant 0 : i32
    return %arg0, %c0_i32 : i32, i32
  }
}

</mosaic_0001>

<llo_original>
// kernel: tpu_custom_call.1
$region0: #{tpu_custom_call.1}
  #allocation0 [shape = 'u32[]', space=smem, size = 0x4, offset = 0x4, fixed_abs, tag = 'smem constant byte address 0x4 - core index']
  #allocation1 [shape = 'u32[72,128]{1,0:T(1,128)}', space=vmem, size = 0x9000, scoped, tag = 'internal scratch']
  %s0 = inlined_call_operand.vmem [shape: f32[8,8], index: 0, kind: input, shape index: {}]
  %s1 = inlined_call_operand.vmem [shape: f32[8,8], index: 1, kind: input, shape index: {}]
  %s2 = inlined_call_operand.vmem [shape: f32[8,8], index: 2, kind: input, shape index: {}]
  %s3 = inlined_call_operand.vmem [shape: f32[8,8], index: 3, kind: input, shape index: {}]
  %s4 = inlined_call_operand.vmem [shape: f32[4,8,4], index: 4, kind: input, shape index: {}]
  %s5 = inlined_call_operand.vmem [shape: f32[1,4], index: 5, kind: input, shape index: {}]
  %s6 = inlined_call_operand.vmem [shape: f32[8,4], index: 6, kind: output, shape index: {}]
  %s7 = sld [smem:[#allocation0]]
  $region34: #{tpu_custom_call.1} parent=0
    _
  %s9 = ssub.s32 1, %s7
  %s10 = scalar_select 0, %s9, %s7
  // Predicated region
  $region2: #{tpu_custom_call.1} parent=0 // pred_check
    _
  $region3: #{tpu_custom_call.1} parent=0 // pred_check_branch
    %12 = sbr.rel (0) target = $region5
  $region4: #{tpu_custom_call.1} parent=0 // pred_region
    _
  $region5: #{tpu_custom_call.1} parent=0 // pred_fallthru
    _
  // Predicated region
  $region6: #{tpu_custom_call.1} parent=0 // pred_check
    _
  $region7: #{tpu_custom_call.1} parent=0 // pred_check_branch
    %14 = sbr.rel (0) target = $region9
  $region8: #{tpu_custom_call.1} parent=0 // pred_region
    _
  $region9: #{tpu_custom_call.1} parent=0 // pred_fallthru
    _
  // Predicated region
  $region10: #{tpu_custom_call.1} parent=0 // pred_check
    _
  $region11: #{tpu_custom_call.1} parent=0 // pred_check_branch
    %16 = sbr.rel (0) target = $region13
  $region12: #{tpu_custom_call.1} parent=0 // pred_region
    _
  $region13: #{tpu_custom_call.1} parent=0 // pred_fallthru
    _
  // Predicated region
  $region14: #{tpu_custom_call.1} parent=0 // pred_check
    _
  $region15: #{tpu_custom_call.1} parent=0 // pred_check_branch
    %18 = sbr.rel (0) target = $region17
  $region16: #{tpu_custom_call.1} parent=0 // pred_region
    _
  $region17: #{tpu_custom_call.1} parent=0 // pred_fallthru
    _
  // Predicated region
  $region18: #{tpu_custom_call.1} parent=0 // pred_check
    _
  $region19: #{tpu_custom_call.1} parent=0 // pred_check_branch
    %20 = sbr.rel (0) target = $region21
  $region20: #{tpu_custom_call.1} parent=0 // pred_region
    _
  $region21: #{tpu_custom_call.1} parent=0 // pred_fallthru
    _
  // Predicated region
  $region22: #{tpu_custom_call.1} parent=0 // pred_check
    _
  $region23: #{tpu_custom_call.1} parent=0 // pred_check_branch
    %22 = sbr.rel (0) target = $region25
  $region24: #{tpu_custom_call.1} parent=0 // pred_region
    _
  $region25: #{tpu_custom_call.1} parent=0 // pred_fallthru
    _
  %v23 = vld [vmem:[%s0] sm:$0xff]
  %v24 = vld [vmem:[%s4] sm:$0xff]
  %v25 = vld [vmem:[%s1] sm:$0xff]
  %s26 = scalar_lea.vmem %s4, 8
  %v27 = vld [vmem:[%s26] sm:$0xff]
  %vm28 = vcmask 64512
  %v30 = vsel %vm28, %v25, 0
  %32 = vmatpush.msra.mxu0 0.0
  %33 = vmatpush.msra.mxu0 0.0
  %34 = vmatpush.msra.mxu0 0.0
  %35 = vmatpush.msra.mxu0 0.0
  %36 = vmatpush.msra.mxu0 0.0
  %37 = vmatpush.msra.mxu0 0.0
  %38 = vmatpush.msra.mxu0 0.0
  %39 = vmatpush.msra.mxu0 0.0
  %40 = vmatpush.msra.mxu0 0.0
  %41 = vmatpush.msra.mxu0 0.0
  %42 = vmatpush.msra.mxu0 0.0
  %43 = vmatpush.msra.mxu0 0.0
  %44 = vmatpush.msra.mxu0 0.0
  %45 = vmatpush.msra.mxu0 0.0
  %46 = vmatpush.msra.mxu0 0.0
  %47 = vmatpush.msra.mxu0 %v27
  %48 = vmatmul.f32.gmra.mxu0 %v30
  %v49 = vpop.f32.mrf.mxu0
  %v50 = vadd.f32 0.0, %v49
  %51 = vdwg.mxu0
  %v53 = vsel %vm28, %v23, 0
  %55 = vmatpush.msra.mxu0 0.0
  %56 = vmatpush.msra.mxu0 0.0
  %57 = vmatpush.msra.mxu0 0.0
  %58 = vmatpush.msra.mxu0 0.0
  %59 = vmatpush.msra.mxu0 0.0
  %60 = vmatpush.msra.mxu0 0.0
  %61 = vmatpush.msra.mxu0 0.0
  %62 = vmatpush.msra.mxu0 0.0
  %63 = vmatpush.msra.mxu0 0.0
  %64 = vmatpush.msra.mxu0 0.0
  %65 = vmatpush.msra.mxu0 0.0
  %66 = vmatpush.msra.mxu0 0.0
  %67 = vmatpush.msra.mxu0 0.0
  %68 = vmatpush.msra.mxu0 0.0
  %69 = vmatpush.msra.mxu0 0.0
  %70 = vmatpush.msra.mxu0 %v24
  %71 = vmatmul.f32.gmra.mxu0 %v53
  %v72 = vpop.f32.mrf.mxu0
  %v73 = vadd.f32 %v50, %v72
  %74 = vdwg.mxu0
  %v75 = vld [vmem:[%s2] sm:$0xff]
  %s76 = scalar_lea.vmem %s4, 16
  %v77 = vld [vmem:[%s76] sm:$0xff]
  %v79 = vsel %vm28, %v75, 0
  %81 = vmatpush.msra.mxu0 0.0
  %82 = vmatpush.msra.mxu0 0.0
  %83 = vmatpush.msra.mxu0 0.0
  %84 = vmatpush.msra.mxu0 0.0
  %85 = vmatpush.msra.mxu0 0.0
  %86 = vmatpush.msra.mxu0 0.0
  %87 = vmatpush.msra.mxu0 0.0
  %88 = vmatpush.msra.mxu0 0.0
  %89 = vmatpush.msra.mxu0 0.0
  %90 = vmatpush.msra.mxu0 0.0
  %91 = vmatpush.msra.mxu0 0.0
  %92 = vmatpush.msra.mxu0 0.0
  %93 = vmatpush.msra.mxu0 0.0
  %94 = vmatpush.msra.mxu0 0.0
  %95 = vmatpush.msra.mxu0 0.0
  %96 = vmatpush.msra.mxu0 %v77
  %97 = vmatmul.f32.gmra.mxu0 %v79
  %v98 = vpop.f32.mrf.mxu0
  %v99 = vadd.f32 0.0, %v98
  %100 = vdwg.mxu0
  %v101 = vadd.f32 %v73, %v99
  %v102 = vld [vmem:[%s3] sm:$0xff]
  %s103 = scalar_lea.vmem %s4, 24
  %v104 = vld [vmem:[%s103] sm:$0xff]
  %v106 = vsel %vm28, %v102, 0
  %108 = vmatpush.msra.mxu0 0.0
  %109 = vmatpush.msra.mxu0 0.0
  %110 = vmatpush.msra.mxu0 0.0
  %111 = vmatpush.msra.mxu0 0.0
  %112 = vmatpush.msra.mxu0 0.0
  %113 = vmatpush.msra.mxu0 0.0
  %114 = vmatpush.msra.mxu0 0.0
  %115 = vmatpush.msra.mxu0 0.0
  %116 = vmatpush.msra.mxu0 0.0
  %117 = vmatpush.msra.mxu0 0.0
  %118 = vmatpush.msra.mxu0 0.0
  %119 = vmatpush.msra.mxu0 0.0
  %120 = vmatpush.msra.mxu0 0.0
  %121 = vmatpush.msra.mxu0 0.0
  %122 = vmatpush.msra.mxu0 0.0
  %123 = vmatpush.msra.mxu0 %v104
  %124 = vmatmul.f32.gmra.mxu0 %v106
  %v125 = vpop.f32.mrf.mxu0
  %v126 = vadd.f32 0.0, %v125
  %127 = vdwg.mxu0
  %v128 = vadd.f32 %v101, %v126
  %v129 = vld [vmem:[%s5] sm:$0x1]
  %v131 = vperm.slane %v129, 0
  %v133 = vadd.f32 %v128, %v131
  %vm134 = vcmask 31744
  %v135 = vsel %vm134, %v133, -inf
  %136 = vmax.xlane.f32.xlu0 %v135
  %v137 = vpop.xlane.xlu0 %136
  %v138 = vsub.f32 %v133, %v137
  %v139 = vmul.f32 %v138, 1.442695
  %v140 = vpow.pop %v139
  %v141 = vsel %vm134, %v140, 0.0
  %142 = vadd.xlane.f32.xlu0 %v141
  %v143 = vpop.xlane.xlu0 %142
  %v144 = vlog2.pop %v143
  %v145 = vmul.f32 %v144, 0.6931472
  %v146 = vsub.f32 %v138, %v145
  %147 = vst.msk [vmem:[%s6] sm:$0xff] %vm134, %v146
  // Predicated region
  $region26: #{tpu_custom_call.1} parent=0 // pred_check
    _
  $region27: #{tpu_custom_call.1} parent=0 // pred_check_branch
    %149 = sbr.rel (0) target = $region29
  $region28: #{tpu_custom_call.1} parent=0 // pred_region
    _
  $region29: #{tpu_custom_call.1} parent=0 // pred_fallthru
    _
  // Predicated region
  $region30: #{tpu_custom_call.1} parent=0 // pred_check
    _
  $region31: #{tpu_custom_call.1} parent=0 // pred_check_branch
    %151 = sbr.rel (0) target = $region33
  $region32: #{tpu_custom_call.1} parent=0 // pred_region
    _
  $region33: #{tpu_custom_call.1} parent=0 // pred_fallthru
    _

</llo_original>
